<compile_context>
chip_gen: v7x
topology: tpu7x:2x2x1
jax: 0.10.0
libtpu: 0.0.40
codegen_flags: <defaults>
</compile_context>

<pallas_src>
import functools

import jax
import jax.numpy as jnp
from jax.experimental import pallas as pl
from jax.experimental.pallas import tpu as pltpu

_NUM_CORES = 2                         # v7x: 2 TCs/chip; harmless (serial) elsewhere
_VMEM_TILE_BUDGET = 36 * 1024 * 1024   # bytes of tile buffers; v7x-safe
_VMEM_LIMIT = 48 * 1024 * 1024         # scoped VMEM limit; < 64 MiB physical on v7x


def _label_smoothing_kernel(pred_ref, target_ref, wtgt_ref, weight_ref,
                            out_ref, acc_ref, *,
                            smoothing, confidence, num_classes, batch_size,
                            tile_rows, steps_per_core):
    """One batch tile: log-softmax pieces + weighted smoothed-CE partial sums."""
    core = pl.program_id(0)
    step = pl.program_id(1)

    @pl.when(step == 0)
    def _init():
        acc_ref[...] = jnp.zeros_like(acc_ref)

    pred = pred_ref[...].astype(jnp.float32)       # (TN, C) — cast in-register only
    tgt = target_ref[...]                          # (TN, 1) int32
    w_tgt = wtgt_ref[...]                          # (TN, 1) f32 = weight[target]
    w_col = weight_ref[...]                        # (C, 1)  f32, resident

    tn, c = pred.shape

    # Row-wise log-softmax pieces; logp itself is never materialized as (TN,C).
    m = jnp.max(pred, axis=-1, keepdims=True)                          # (TN,1)
    shifted = pred - m                                                 # (TN,C)
    lse = jnp.log(jnp.sum(jnp.exp(shifted), axis=-1, keepdims=True))   # (TN,1)

    # sum_c w_c * logp_c = dot(shifted, w) - lse * sum(w)   (weighted sum on MXU)
    sum_w = jnp.sum(w_col)
    dot_sw = jnp.dot(shifted, w_col, preferred_element_type=jnp.float32,
                     precision=jax.lax.Precision.HIGHEST)              # (TN,1)

    # logp at the target class: single compare + select + lane-reduce on shifted.
    col = jax.lax.broadcasted_iota(jnp.int32, (tn, c), 1)
    shifted_tgt = jnp.sum(jnp.where(col == tgt, shifted, 0.0), axis=-1,
                          keepdims=True)                               # (TN,1)

    uniform = smoothing / num_classes
    # per_row = -uniform*sum_c(w*logp) - (conf-uniform)*w_tgt*logp_tgt
    per_row = ((-uniform) * (dot_sw - lse * sum_w)
               - (confidence - uniform) * (w_tgt * (shifted_tgt - lse)))  # (TN,1)

    # Mask rows past the true batch (partial last tile / clamped duplicate block).
    row0 = (core * steps_per_core + step) * tile_rows
    row = jax.lax.broadcasted_iota(jnp.int32, (tn, 1), 0) + row0
    per_row = jnp.where(row < batch_size, per_row, 0.0)

    # Defer the cross-sublane reduction to the finalize step (plain VPU add here).
    acc_ref[...] += per_row

    @pl.when(step == pl.num_programs(1) - 1)
    def _finalize():
        out_ref[0] = jnp.sum(acc_ref[...], axis=0, keepdims=True)      # (1,1) partial


def _choose_tile_rows(n, c, itemsize, vmem_budget_bytes=_VMEM_TILE_BUDGET):
    """Rows per tile so total tile VMEM stays under the budget.

    Per-row VMEM cost (lane padding included):
      pred tile:       round_up(C,128)*itemsize, double-buffered
      target + w_tgt:  (TN,1) blocks pad lanes to 128 -> 512 B each, x2 buffers
      accumulator:     (TN,1) f32 scratch, single copy
    """
    padded_c = -(-c // 128) * 128
    per_row = 2 * padded_c * itemsize + 4 * 512 + 512
    rows = vmem_budget_bytes // per_row
    rows = max(8, int(rows) - int(rows) % 8)
    return n if n <= rows else rows


def label_smoothing_loss(pred, target, weight, *, smoothing, tile_rows=None):
    """pred: (N, C) float (any dtype), target: (N,) int, weight: (C,) -> scalar f32."""
    n, c = pred.shape
    confidence = 1.0 - smoothing

    target_i32 = target.astype(jnp.int32)
    target2d = target_i32.reshape(n, 1)
    w_f32 = weight.astype(jnp.float32)
    weight_col = w_f32.reshape(c, 1)
    w_tgt = w_f32[target_i32].reshape(n, 1)        # tiny gather done in the wrapper

    if tile_rows is None:
        tile_rows = _choose_tile_rows(n, c, pred.dtype.itemsize)
    tile_rows = min(int(tile_rows), n)
    if tile_rows < n:
        tile_rows = max(8, tile_rows - tile_rows % 8)   # sublane-aligned tiles

    nblocks = -(-n // tile_rows)
    steps_per_core = -(-nblocks // _NUM_CORES)
    grid = (_NUM_CORES, steps_per_core)

    def row_map(ci, si):
        # Clamp so the (possibly empty) tail step on the last core re-reads a
        # valid block; its rows are masked out inside the kernel.
        return (jnp.minimum(ci * steps_per_core + si, nblocks - 1), 0)

    kernel = functools.partial(
        _label_smoothing_kernel,
        smoothing=float(smoothing),
        confidence=float(confidence),
        num_classes=c,
        batch_size=n,
        tile_rows=tile_rows,
        steps_per_core=steps_per_core,
    )

    bytes_accessed = (n * c * pred.dtype.itemsize   # pred (native dtype)
                      + n * 4                       # target
                      + n * 4                       # weight[target]
                      + c * 4                       # weight
                      + _NUM_CORES * 4)             # partial sums
    cost = pl.CostEstimate(
        flops=8 * n * c,
        transcendentals=n * c + n,                  # exp per element, log per row
        bytes_accessed=bytes_accessed,
    )

    partials = pl.pallas_call(
        kernel,
        out_shape=jax.ShapeDtypeStruct((_NUM_CORES, 1, 1), jnp.float32),
        grid=grid,
        in_specs=[
            pl.BlockSpec((tile_rows, c), row_map),          # pred tile (pipelined)
            pl.BlockSpec((tile_rows, 1), row_map),          # target tile
            pl.BlockSpec((tile_rows, 1), row_map),          # weight[target] tile
            pl.BlockSpec((c, 1), lambda ci, si: (0, 0)),    # weight, resident
        ],
        out_specs=pl.BlockSpec((1, 1, 1), lambda ci, si: (ci, 0, 0)),
        scratch_shapes=[pltpu.VMEM((tile_rows, 1), jnp.float32)],  # per-row partials
        compiler_params=pltpu.CompilerParams(
            dimension_semantics=("parallel", "arbitrary"),  # cores x batch-reduction
            vmem_limit_bytes=_VMEM_LIMIT,
        ),
        cost_estimate=cost,
    )(pred, target2d, w_tgt, weight_col)

    return jnp.sum(partials) * (1.0 / n)


def _reference_loss(pred, target, weight, *, smoothing):
    """Pure-JAX reference mirroring the PyTorch module."""
    n, c = pred.shape
    confidence = 1.0 - smoothing
    logp = jax.nn.log_softmax(pred.astype(jnp.float32), axis=-1)
    true_dist = jnp.full((n, c), smoothing / c, dtype=jnp.float32)
    true_dist = true_dist.at[jnp.arange(n), target].set(confidence)
    per_row = jnp.sum(-true_dist * logp * weight[None, :].astype(jnp.float32), axis=-1)
    return jnp.mean(per_row)


if __name__ == "__main__":
    # Module __init__: classes=C, smoothing=0.1, weight=None -> ones(C)/C
    N, C = 8, 16
    smoothing = 0.1

    key = jax.random.PRNGKey(0)
    k_pred, k_tgt, k_pred2, k_tgt2, k_w2 = jax.random.split(key, 5)

    # Test 1: f32, single block, two-core grid with fully-masked second core.
    pred = jax.random.normal(k_pred, (N, C), dtype=jnp.float32)
    target = jax.random.randint(k_tgt, (N,), 0, C, dtype=jnp.int32)
    weight = jnp.ones((C,), dtype=jnp.float32) / C   # deterministic default init

    loss = jax.block_until_ready(
        label_smoothing_loss(pred, target, weight, smoothing=smoothing))
    ref = jax.block_until_ready(
        _reference_loss(pred, target, weight, smoothing=smoothing))
    assert jnp.allclose(loss, ref, rtol=1e-5, atol=1e-5), (loss, ref)

    # Test 2: bf16 pred, non-uniform weight, multi-step grid with odd block count
    # (clamped duplicate block on core 1) and a partial last tile.
    N2 = 200
    pred2 = jax.random.normal(k_pred2, (N2, C), dtype=jnp.float32).astype(jnp.bfloat16)
    target2 = jax.random.randint(k_tgt2, (N2,), 0, C, dtype=jnp.int32)
    weight2 = jax.random.uniform(k_w2, (C,), minval=0.5, maxval=1.5,
                                 dtype=jnp.float32)
    loss2 = jax.block_until_ready(
        label_smoothing_loss(pred2, target2, weight2, smoothing=smoothing,
                             tile_rows=48))
    ref2 = jax.block_until_ready(
        _reference_loss(pred2, target2, weight2, smoothing=smoothing))
    assert jnp.allclose(loss2, ref2, rtol=1e-4, atol=1e-5), (loss2, ref2)

    print("KERNEL_OK")
</pallas_src>

<mosaic_0001>
module attributes {stable_mosaic.version = 11 : i64} {
  func.func @_label_smoothing_kernel(%arg0: i32, %arg1: i32, %arg2: memref<8x16xf32, #tpu.memory_space<vmem>>, %arg3: memref<8x1xi32, #tpu.memory_space<vmem>>, %arg4: memref<8x1xf32, #tpu.memory_space<vmem>>, %arg5: memref<16x1xf32, #tpu.memory_space<vmem>>, %arg6: memref<1x1x1xf32, #tpu.memory_space<vmem>>, %arg7: memref<8x1xf32, #tpu.memory_space<vmem>>) attributes {dimension_semantics = [#tpu.dimension_semantics<parallel>, #tpu.dimension_semantics<arbitrary>], iteration_bounds = array<i64: 2, 1>, scalar_prefetch = 0 : i64, scratch_operands = 1 : i64, tpu.core_type = #tpu.core_type<tc>, window_params = [{transform_indices = @transform_0, window_bounds = array<i64: 8, 16>}, {transform_indices = @transform_1, window_bounds = array<i64: 8, 1>}, {transform_indices = @transform_2, window_bounds = array<i64: 8, 1>}, {pipeline_mode = #tpu.pipeline_mode<synchronous>, transform_indices = @transform_3, window_bounds = array<i64: 16, 1>}, {transform_indices = @transform_4, window_bounds = array<i64: 1, 1, 1>}]} {
    %c0_i32 = arith.constant 0 : i32
    %0 = arith.cmpi eq, %arg1, %c0_i32 : i32
    %1 = arith.extui %0 : i1 to i32
    %c0_i32_0 = arith.constant 0 : i32
    %2 = arith.cmpi ne, %1, %c0_i32_0 : i32
    scf.if %2 {
      %cst_23 = arith.constant 0.000000e+00 : f32
      %53 = vector.broadcast %cst_23 : f32 to vector<8x1xf32>
      %c0_24 = arith.constant 0 : index
      %c0_25 = arith.constant 0 : index
      %54 = vector.load %arg7[%c0_24, %c0_25] : memref<8x1xf32, #tpu.memory_space<vmem>>, vector<8x1xf32>
      tpu.vector_store %arg7[%c0_24, %c0_25], %53 {strides = array<i32>} : memref<8x1xf32, #tpu.memory_space<vmem>>, vector<8x1xf32>,
    } else {
    }
    %c0 = arith.constant 0 : index
    %c0_1 = arith.constant 0 : index
    %3 = vector.load %arg2[%c0, %c0_1] : memref<8x16xf32, #tpu.memory_space<vmem>>, vector<8x16xf32>
    %c0_2 = arith.constant 0 : index
    %c0_3 = arith.constant 0 : index
    %4 = vector.load %arg3[%c0_2, %c0_3] : memref<8x1xi32, #tpu.memory_space<vmem>>, vector<8x1xi32>
    %c0_4 = arith.constant 0 : index
    %c0_5 = arith.constant 0 : index
    %5 = vector.load %arg4[%c0_4, %c0_5] : memref<8x1xf32, #tpu.memory_space<vmem>>, vector<8x1xf32>
    %c0_6 = arith.constant 0 : index
    %c0_7 = arith.constant 0 : index
    %6 = vector.load %arg5[%c0_6, %c0_7] : memref<16x1xf32, #tpu.memory_space<vmem>>, vector<16x1xf32>
    %cst = arith.constant dense<0xFF800000> : vector<8xf32>
    %7 = vector.multi_reduction <maximumf>, %3, %cst [1] : vector<8x16xf32> to vector<8xf32>
    %8 = vector.shape_cast %7 : vector<8xf32> to vector<8x1xf32>
    %9 = vector.broadcast %8 : vector<8x1xf32> to vector<8x16xf32>
    %10 = arith.subf %3, %9 : vector<8x16xf32>
    %11 = math.exp %10 : vector<8x16xf32>
    %cst_8 = arith.constant dense<0.000000e+00> : vector<8xf32>
    %12 = vector.multi_reduction <add>, %11, %cst_8 [1] : vector<8x16xf32> to vector<8xf32>
    %13 = vector.shape_cast %12 : vector<8xf32> to vector<8x1xf32>
    %14 = math.log %13 : vector<8x1xf32>
    %15 = vector.shape_cast %6 : vector<16x1xf32> to vector<1x16x1xf32>
    %cst_9 = arith.constant dense<0.000000e+00> : vector<1xf32>
    %16 = vector.multi_reduction <add>, %15, %cst_9 [1, 2] : vector<1x16x1xf32> to vector<1xf32>
    %17 = vector.shape_cast %16 : vector<1xf32> to vector<1x1x1xf32>
    %18 = vector.extract %17[0, 0, 0] : f32 from vector<1x1x1xf32>
    %cst_10 = arith.constant dense<0.000000e+00> : vector<8x1xf32>
    %19 = tpu.matmul %10, %6, %cst_10 {dimension_numbers = #tpu.dot_dimension_numbers<[1], [0], [0], [1], [0, 0, 1, 1], [], []>, precision = #tpu.contract_precision<fp32>} : vector<8x16xf32>, vector<16x1xf32>, vector<8x1xf32> -> vector<8x1xf32>
    %20 = tpu.iota {dimensions = array<i32: 1>} : vector<8x16xi32>
    %21 = vector.broadcast %4 : vector<8x1xi32> to vector<8x16xi32>
    %22 = arith.cmpi eq, %20, %21 : vector<8x16xi32>
    %cst_11 = arith.constant 0.000000e+00 : f32
    %23 = vector.broadcast %cst_11 : f32 to vector<8x16xf32>
    %24 = arith.select %22, %10, %23 : vector<8x16xi1>, vector<8x16xf32>
    %cst_12 = arith.constant dense<0.000000e+00> : vector<8xf32>
    %25 = vector.multi_reduction <add>, %24, %cst_12 [1] : vector<8x16xf32> to vector<8xf32>
    %26 = vector.shape_cast %25 : vector<8xf32> to vector<8x1xf32>
    %27 = vector.broadcast %18 : f32 to vector<8x1xf32>
    %28 = arith.mulf %14, %27 : vector<8x1xf32>
    %29 = arith.subf %19, %28 : vector<8x1xf32>
    %cst_13 = arith.constant -6.250000e-03 : f32
    %30 = vector.broadcast %cst_13 : f32 to vector<8x1xf32>
    %31 = arith.mulf %30, %29 : vector<8x1xf32>
    %32 = arith.subf %26, %14 : vector<8x1xf32>
    %33 = arith.mulf %5, %32 : vector<8x1xf32>
    %cst_14 = arith.constant 8.937500e-01 : f32
    %34 = vector.broadcast %cst_14 : f32 to vector<8x1xf32>
    %35 = arith.mulf %34, %33 : vector<8x1xf32>
    %36 = arith.subf %31, %35 : vector<8x1xf32>
    %c1_i32 = arith.constant 1 : i32
    %37 = arith.muli %arg0, %c1_i32 : i32
    %38 = arith.addi %37, %arg1 : i32
    %c8_i32 = arith.constant 8 : i32
    %39 = arith.muli %38, %c8_i32 : i32
    %40 = tpu.iota {dimensions = array<i32: 0>} : vector<8x1xi32>
    %41 = vector.broadcast %39 : i32 to vector<8x1xi32>
    %42 = arith.addi %40, %41 : vector<8x1xi32>
    %c8_i32_15 = arith.constant 8 : i32
    %43 = vector.broadcast %c8_i32_15 : i32 to vector<8x1xi32>
    %44 = arith.cmpi slt, %42, %43 : vector<8x1xi32>
    %cst_16 = arith.constant 0.000000e+00 : f32
    %45 = vector.broadcast %cst_16 : f32 to vector<8x1xf32>
    %46 = arith.select %44, %36, %45 : vector<8x1xi1>, vector<8x1xf32>
    %c0_17 = arith.constant 0 : index
    %c0_18 = arith.constant 0 : index
    %47 = vector.load %arg7[%c0_17, %c0_18] : memref<8x1xf32, #tpu.memory_space<vmem>>, vector<8x1xf32>
    %48 = arith.addf %47, %46 : vector<8x1xf32>
    %c0_19 = arith.constant 0 : index
    %c0_20 = arith.constant 0 : index
    %49 = vector.load %arg7[%c0_19, %c0_20] : memref<8x1xf32, #tpu.memory_space<vmem>>, vector<8x1xf32>
    tpu.vector_store %arg7[%c0_19, %c0_20], %48 {strides = array<i32>} : memref<8x1xf32, #tpu.memory_space<vmem>>, vector<8x1xf32>,
    %c0_i32_21 = arith.constant 0 : i32
    %50 = arith.cmpi eq, %arg1, %c0_i32_21 : i32
    %51 = arith.extui %50 : i1 to i32
    %c0_i32_22 = arith.constant 0 : i32
    %52 = arith.cmpi ne, %51, %c0_i32_22 : i32
    scf.if %52 {
      %c0_23 = arith.constant 0 : index
      %c0_24 = arith.constant 0 : index
      %53 = vector.load %arg7[%c0_23, %c0_24] : memref<8x1xf32, #tpu.memory_space<vmem>>, vector<8x1xf32>
      %cst_25 = arith.constant dense<0.000000e+00> : vector<1xf32>
      %54 = vector.multi_reduction <add>, %53, %cst_25 [0] : vector<8x1xf32> to vector<1xf32>
      %55 = vector.shape_cast %54 : vector<1xf32> to vector<1x1xf32>
      %c0_26 = arith.constant 0 : index
      %c0_27 = arith.constant 0 : index
      %c0_28 = arith.constant 0 : index
      %56 = vector.load %arg6[%c0_26, %c0_27, %c0_28] : memref<1x1x1xf32, #tpu.memory_space<vmem>>, vector<1x1x1xf32>
      %57 = vector.shape_cast %56 : vector<1x1x1xf32> to vector<1x1xf32>
      %58 = vector.shape_cast %55 : vector<1x1xf32> to vector<1x1x1xf32>
      tpu.vector_store %arg6[%c0_26, %c0_27, %c0_28], %58 {strides = array<i32>} : memref<1x1x1xf32, #tpu.memory_space<vmem>>, vector<1x1x1xf32>,
    } else {
    }
    return
  }
  func.func @transform_0(%arg0: i32, %arg1: i32) -> (i32, i32) {
    %c1_i32 = arith.constant 1 : i32
    %0 = arith.muli %arg0, %c1_i32 : i32
    %1 = arith.addi %0, %arg1 : i32
    %c0_i32 = arith.constant 0 : i32
    %2 = arith.minsi %1, %c0_i32 : i32
    %c0_i32_0 = arith.constant 0 : i32
    %c0_i32_1 = arith.constant 0 : i32
    return %2, %c0_i32_0 : i32, i32
  }
  func.func @transform_1(%arg0: i32, %arg1: i32) -> (i32, i32) {
    %c1_i32 = arith.constant 1 : i32
    %0 = arith.muli %arg0, %c1_i32 : i32
    %1 = arith.addi %0, %arg1 : i32
    %c0_i32 = arith.constant 0 : i32
    %2 = arith.minsi %1, %c0_i32 : i32
    %c0_i32_0 = arith.constant 0 : i32
    %c0_i32_1 = arith.constant 0 : i32
    return %2, %c0_i32_0 : i32, i32
  }
  func.func @transform_2(%arg0: i32, %arg1: i32) -> (i32, i32) {
    %c1_i32 = arith.constant 1 : i32
    %0 = arith.muli %arg0, %c1_i32 : i32
    %1 = arith.addi %0, %arg1 : i32
    %c0_i32 = arith.constant 0 : i32
    %2 = arith.minsi %1, %c0_i32 : i32
    %c0_i32_0 = arith.constant 0 : i32
    %c0_i32_1 = arith.constant 0 : i32
    return %2, %c0_i32_0 : i32, i32
  }
  func.func @transform_3(%arg0: i32, %arg1: i32) -> (i32, i32) {
    %c0_i32 = arith.constant 0 : i32
    %c0_i32_0 = arith.constant 0 : i32
    %c0_i32_1 = arith.constant 0 : i32
    return %c0_i32, %c0_i32_0 : i32, i32
  }
  func.func @transform_4(%arg0: i32, %arg1: i32) -> (i32, i32, i32) {
    %c0_i32 = arith.constant 0 : i32
    %c0_i32_0 = arith.constant 0 : i32
    %c0_i32_1 = arith.constant 0 : i32
    return %arg0, %c0_i32, %c0_i32_0 : i32, i32, i32
  }
}

</mosaic_0001>

<llo_original>
// kernel: tpu_custom_call.1
$region0: #{tpu_custom_call.1}
  #allocation0 [shape = 'u32[]', space=smem, size = 0x4, offset = 0x4, fixed_abs, tag = 'smem constant byte address 0x4 - core index']
  #allocation1 [shape = 'u32[144,128]{1,0:T(1,128)}', space=vmem, size = 0x12000, scoped, tag = 'internal scratch']
  #allocation2 [shape = 'f32[8,1]{1,0:T(8,128)}', space=vmem, size = 0x1000, scoped, tag = 'scratch operand']
  %s0 = inlined_call_operand.vmem [shape: f32[8,16], index: 0, kind: input, shape index: {}]
  %s1 = inlined_call_operand.vmem [shape: s32[8,1], index: 1, kind: input, shape index: {}]
  %s2 = inlined_call_operand.vmem [shape: f32[8,1], index: 2, kind: input, shape index: {}]
  %s3 = inlined_call_operand.vmem [shape: f32[16,1], index: 3, kind: input, shape index: {}]
  %s4 = inlined_call_operand.vmem [shape: f32[2,1,1], index: 4, kind: output, shape index: {}]
  %s5 = sld [smem:[#allocation0]]
  $region57: #{tpu_custom_call.1} parent=0
    _
  %s7 = ssub.s32 1, %s5
  %s8 = scalar_select 0, %s7, %s5
  loop: start=0, step=1, limit=4
  $region2: #{tpu_custom_call.1} parent=0 // loop_pre_header
    _
  $region3: #{tpu_custom_call.1} parent=0 // loop_header
    %s10 = sphi 0, %s14
    %p11 = scmp.ge.s32.totalorder %s10, 4
    %s17 = sphi 0, %s29
    %s18 = sphi 0, %s25
    %s19 = sphi 0, %s17
    %s20 = sphi 0, %s18
    %s21 = sphi 0, %s19
    %s22 = sphi 0, %s20
    %s38 = sphi 0, %s40
    %s41 = sphi 0, %s38
    %s42 = sphi 0, %s41
    %s58 = sphi 0, %s42
    %s70 = sphi 0, %s72
    %s73 = sphi 0, %s70
    %s74 = sphi 0, %s73
    %s90 = sphi 0, %s74
    %s102 = sphi 0, %s104
    %s105 = sphi 0, %s102
    %s106 = sphi 0, %s105
    %s122 = sphi 0, %s106
    %s126 = sphi 0, %s126
    %s128 = sphi 0, %s126
    %s129 = sphi 0, %s128
    %s143 = sphi 0, %s129
    %s149 = sphi 0, %s151
    %s152 = sphi 0, %s149
    %s153 = sphi 0, %s152
    %s169 = sphi 0, %s153
  $region4: #{tpu_custom_call.1} parent=0 // loop_header_branch
    %13 = sbr.rel (%p11) target = $region8
  $region5: #{tpu_custom_call.1} parent=0 // loop_body
    %s15 = ssub.s32 %s10, 1
    %s16 = ssub.s32 %s10, 2
    %s23 = sadd.s32 1, %s18
    %p24 = scmp.ge.s32.totalorder %s23, 1
    %s25 = scalar_select %p24, 0, %s23
    %s26 = sadd.s32 1, %s17
    %s27 = scalar_select %p24, %s26, %s17
    %p28 = scmp.ge.s32.totalorder %s27, 2
    %s29 = scalar_select %p28, 0, %s27
    %s30 = sadd.s32 %s17, %s18
    %p31 = scmp.lt.s32.totalorder %s30, 0
    %s32 = scalar_select %p31, %s30, 0
    %s33 = sadd.s32 %s29, %s25
    %p34 = scmp.lt.s32.totalorder %s33, 0
    %s35 = scalar_select %p34, %s33, 0
    %s36 = ssub.s32 %s32, %s35
    %p37 = scmp.eq.s32.totalorder %s36, 0
    %s39 = sadd.s32 %s38, 1
    %s40 = scalar_select %p37, %s38, %s39
    %p43 = pneg %p37
    %p44 = scmp.eq.s32.totalorder %s10, 1
    %p45 = por %p43, %p44
    %p46 = scmp.ne.s32.totalorder %s38, %s41
    %p47 = scmp.eq.s32.totalorder %s10, 0
    %p48 = por %p46, %p47
    %p49 = scmp.ne.s32.totalorder %s38, %s41
    %p50 = scmp.eq.s32.totalorder %s15, 1
    %p51 = por %p49, %p50
    %p52 = scmp.ne.s32.totalorder %s41, %s42
    %p53 = scmp.eq.s32.totalorder %s15, 0
    %p54 = por %p52, %p53
    %p55 = scmp.ne.s32.totalorder %s41, %s42
    %p56 = scmp.eq.s32.totalorder %s16, 1
    %p57 = por %p55, %p56
    %p59 = scmp.ne.s32.totalorder %s42, %s58
    %p60 = scmp.eq.s32.totalorder %s16, 0
    %p61 = por %p59, %p60
    %s62 = sadd.s32 %s17, %s18
    %p63 = scmp.lt.s32.totalorder %s62, 0
    %s64 = scalar_select %p63, %s62, 0
    %s65 = sadd.s32 %s29, %s25
    %p66 = scmp.lt.s32.totalorder %s65, 0
    %s67 = scalar_select %p66, %s65, 0
    %s68 = ssub.s32 %s64, %s67
    %p69 = scmp.eq.s32.totalorder %s68, 0
    %s71 = sadd.s32 %s70, 1
    %s72 = scalar_select %p69, %s70, %s71
    %p75 = pneg %p69
    %p76 = scmp.eq.s32.totalorder %s10, 1
    %p77 = por %p75, %p76
    %p78 = scmp.ne.s32.totalorder %s70, %s73
    %p79 = scmp.eq.s32.totalorder %s10, 0
    %p80 = por %p78, %p79
    %p81 = scmp.ne.s32.totalorder %s70, %s73
    %p82 = scmp.eq.s32.totalorder %s15, 1
    %p83 = por %p81, %p82
    %p84 = scmp.ne.s32.totalorder %s73, %s74
    %p85 = scmp.eq.s32.totalorder %s15, 0
    %p86 = por %p84, %p85
    %p87 = scmp.ne.s32.totalorder %s73, %s74
    %p88 = scmp.eq.s32.totalorder %s16, 1
    %p89 = por %p87, %p88
    %p91 = scmp.ne.s32.totalorder %s74, %s90
    %p92 = scmp.eq.s32.totalorder %s16, 0
    %p93 = por %p91, %p92
    %s94 = sadd.s32 %s17, %s18
    %p95 = scmp.lt.s32.totalorder %s94, 0
    %s96 = scalar_select %p95, %s94, 0
    %s97 = sadd.s32 %s29, %s25
    %p98 = scmp.lt.s32.totalorder %s97, 0
    %s99 = scalar_select %p98, %s97, 0
    %s100 = ssub.s32 %s96, %s99
    %p101 = scmp.eq.s32.totalorder %s100, 0
    %s103 = sadd.s32 %s102, 1
    %s104 = scalar_select %p101, %s102, %s103
    %p107 = pneg %p101
    %p108 = scmp.eq.s32.totalorder %s10, 1
    %p109 = por %p107, %p108
    %p110 = scmp.ne.s32.totalorder %s102, %s105
    %p111 = scmp.eq.s32.totalorder %s10, 0
    %p112 = por %p110, %p111
    %p113 = scmp.ne.s32.totalorder %s102, %s105
    %p114 = scmp.eq.s32.totalorder %s15, 1
    %p115 = por %p113, %p114
    %p116 = scmp.ne.s32.totalorder %s105, %s106
    %p117 = scmp.eq.s32.totalorder %s15, 0
    %p118 = por %p116, %p117
    %p119 = scmp.ne.s32.totalorder %s105, %s106
    %p120 = scmp.eq.s32.totalorder %s16, 1
    %p121 = por %p119, %p120
    %p123 = scmp.ne.s32.totalorder %s106, %s122
    %p124 = scmp.eq.s32.totalorder %s16, 0
    %p125 = por %p123, %p124
    %s127 = sadd.s32 %s126, 1
    %p130 = scmp.eq.s32.totalorder %s10, 1
    %p131 = scmp.ne.s32.totalorder %s126, %s128
    %p132 = scmp.eq.s32.totalorder %s10, 0
    %p133 = por %p131, %p132
    %p134 = scmp.ne.s32.totalorder %s126, %s128
    %p135 = scmp.eq.s32.totalorder %s15, 1
    %p136 = por %p134, %p135
    %p137 = scmp.ne.s32.totalorder %s128, %s129
    %p138 = scmp.eq.s32.totalorder %s15, 0
    %p139 = por %p137, %p138
    %p140 = scmp.ne.s32.totalorder %s128, %s129
    %p141 = scmp.eq.s32.totalorder %s16, 1
    %p142 = por %p140, %p141
    %p144 = scmp.ne.s32.totalorder %s129, %s143
    %p145 = scmp.eq.s32.totalorder %s16, 0
    %p146 = por %p144, %p145
    %s147 = ssub.s32 %s17, %s29
    %p148 = scmp.eq.s32.totalorder %s147, 0
    %s150 = sadd.s32 %s149, 1
    %s151 = scalar_select %p148, %s149, %s150
    %p154 = pneg %p148
    %p155 = scmp.eq.s32.totalorder %s10, 1
    %p156 = por %p154, %p155
    %p157 = scmp.ne.s32.totalorder %s149, %s152
    %p158 = scmp.eq.s32.totalorder %s10, 0
    %p159 = por %p157, %p158
    %p160 = scmp.ne.s32.totalorder %s149, %s152
    %p161 = scmp.eq.s32.totalorder %s15, 1
    %p162 = por %p160, %p161
    %p163 = scmp.ne.s32.totalorder %s152, %s153
    %p164 = scmp.eq.s32.totalorder %s15, 0
    %p165 = por %p163, %p164
    %p166 = scmp.ne.s32.totalorder %s152, %s153
    %p167 = scmp.eq.s32.totalorder %s16, 1
    %p168 = por %p166, %p167
    %p170 = scmp.ne.s32.totalorder %s153, %s169
    %p171 = scmp.eq.s32.totalorder %s16, 0
    %p172 = por %p170, %p171
    %p173 = scmp.le.s32.totalorder 1, %s10
    %p174 = scmp.lt.s32.totalorder %s10, 3
    %p175 = pnand %p173, %p174
    %p176 = pneg %p175
    // Predicated region
    $region9: #{tpu_custom_call.1} parent=5 // pred_check
      _
    $region10: #{tpu_custom_call.1} parent=5 // pred_check_branch
      %178 = sbr.rel (%p175) target = $region12
    $region11: #{tpu_custom_call.1} parent=5 // pred_region
      %s179 = ssub.s32 %s10, 1
      // Predicated region
      $region13: #{tpu_custom_call.1} parent=11 // pred_check
        %p180 = pneg %p139
      $region14: #{tpu_custom_call.1} parent=11 // pred_check_branch
        %182 = sbr.rel (%p180) target = $region16
      $region15: #{tpu_custom_call.1} parent=11 // pred_region
        _
      $region16: #{tpu_custom_call.1} parent=11 // pred_fallthru
        _
    $region12: #{tpu_custom_call.1} parent=5 // pred_fallthru
      _
    %p183 = scmp.lt.s32.totalorder %s10, 2
    // Predicated region
    $region17: #{tpu_custom_call.1} parent=5 // pred_check
      %p184 = pneg %p183
    $region18: #{tpu_custom_call.1} parent=5 // pred_check_branch
      %186 = sbr.rel (%p184) target = $region20
    $region19: #{tpu_custom_call.1} parent=5 // pred_region
      // Predicated region
      $region21: #{tpu_custom_call.1} parent=19 // pred_check
        %p187 = pneg %p48
      $region22: #{tpu_custom_call.1} parent=19 // pred_check_branch
        %189 = sbr.rel (%p187) target = $region24
      $region23: #{tpu_custom_call.1} parent=19 // pred_region
        %s190 = sadd.s32 %s17, %s18
        %p191 = scmp.lt.s32.totalorder %s190, 0
        %s192 = scalar_select %p191, %s190, 0
        %p193 = scmp.lt.s32.totalorder %s192, 0
        %s194 = scalar_select %p193, %s192, 0
        %s195 = smul.addr %s194, 8
        %s196 = scalar_lea.vmem %s0, %s195
        %s197 = sadd.s32 %s17, %s18
        %p198 = scmp.lt.s32.totalorder %s197, 0
        %s199 = scalar_select %p198, %s197, 0
      $region24: #{tpu_custom_call.1} parent=19 // pred_fallthru
        _
      // Predicated region
      $region25: #{tpu_custom_call.1} parent=19 // pred_check
        %p200 = pneg %p80
      $region26: #{tpu_custom_call.1} parent=19 // pred_check_branch
        %202 = sbr.rel (%p200) target = $region28
      $region27: #{tpu_custom_call.1} parent=19 // pred_region
        %s203 = sadd.s32 %s17, %s18
        %p204 = scmp.lt.s32.totalorder %s203, 0
        %s205 = scalar_select %p204, %s203, 0
        %p206 = scmp.lt.s32.totalorder %s205, 0
        %s207 = scalar_select %p206, %s205, 0
        %s208 = smul.addr %s207, 8
        %s209 = scalar_lea.vmem %s1, %s208
        %s210 = sadd.s32 %s17, %s18
        %p211 = scmp.lt.s32.totalorder %s210, 0
        %s212 = scalar_select %p211, %s210, 0
      $region28: #{tpu_custom_call.1} parent=19 // pred_fallthru
        _
      // Predicated region
      $region29: #{tpu_custom_call.1} parent=19 // pred_check
        %p213 = pneg %p112
      $region30: #{tpu_custom_call.1} parent=19 // pred_check_branch
        %215 = sbr.rel (%p213) target = $region32
      $region31: #{tpu_custom_call.1} parent=19 // pred_region
        %s216 = sadd.s32 %s17, %s18
        %p217 = scmp.lt.s32.totalorder %s216, 0
        %s218 = scalar_select %p217, %s216, 0
        %p219 = scmp.lt.s32.totalorder %s218, 0
        %s220 = scalar_select %p219, %s218, 0
        %s221 = smul.addr %s220, 8
        %s222 = scalar_lea.vmem %s2, %s221
        %s223 = sadd.s32 %s17, %s18
        %p224 = scmp.lt.s32.totalorder %s223, 0
        %s225 = scalar_select %p224, %s223, 0
      $region32: #{tpu_custom_call.1} parent=19 // pred_fallthru
        _
    $region20: #{tpu_custom_call.1} parent=5 // pred_fallthru
      _
    %p226 = scmp.le.s32.totalorder 1, %s10
    %p227 = scmp.lt.s32.totalorder %s10, 3
    %p228 = pnand %p226, %p227
    %p229 = pneg %p228
    // Predicated region
    $region33: #{tpu_custom_call.1} parent=5 // pred_check
      _
    $region34: #{tpu_custom_call.1} parent=5 // pred_check_branch
      %231 = sbr.rel (%p228) target = $region36
    $region35: #{tpu_custom_call.1} parent=5 // pred_region
      %s232 = ssub.s32 %s10, 1
      %s233 = sadd.s32 %s19, %s20
      %p234 = scmp.lt.s32.totalorder %s233, 0
      %s235 = scalar_select %p234, %s233, 0
      %p236 = scmp.lt.s32.totalorder %s235, 0
      %s237 = scalar_select %p236, %s235, 0
      %s238 = smul.addr %s237, 8
      %s239 = scalar_lea.vmem %s0, %s238
      %p240 = pneg %p54
      %p241 = pneg %p51
      %s242 = sadd.s32 %s19, %s20
      %p243 = scmp.lt.s32.totalorder %s242, 0
      %s244 = scalar_select %p243, %s242, 0
      %p245 = scmp.lt.s32.totalorder %s244, 0
      %s246 = scalar_select %p245, %s244, 0
      %s247 = smul.addr %s246, 8
      %s248 = scalar_lea.vmem %s1, %s247
      %p249 = pneg %p86
      %p250 = pneg %p83
      %s251 = sadd.s32 %s19, %s20
      %p252 = scmp.lt.s32.totalorder %s251, 0
      %s253 = scalar_select %p252, %s251, 0
      %p254 = scmp.lt.s32.totalorder %s253, 0
      %s255 = scalar_select %p254, %s253, 0
      %s256 = smul.addr %s255, 8
      %s257 = scalar_lea.vmem %s2, %s256
      %p258 = pneg %p118
      %p259 = pneg %p115
      %p260 = pneg %p139
      %p261 = pneg %p136
      %p262 = pneg %p165
      %p263 = pneg %p162
      %p264 = scmp.lt.s32.totalorder %s19, 1
      %s265 = scalar_select %p264, %s19, 1
      %s266 = scalar_lea.vmem %s4, %s265
      %s267 = sadd.s32 %s19, %s20
      %p268 = scmp.lt.s32.totalorder %s267, 0
      %s269 = scalar_select %p268, %s267, 0
      %p270 = scmp.lt.s32.totalorder %s269, 0
      %s271 = scalar_select %p270, %s269, 0
      %s272 = smul.addr %s271, 8
      %s273 = scalar_lea.vmem %s0, %s272
      %s274 = sadd.s32 %s19, %s20
      %p275 = scmp.lt.s32.totalorder %s274, 0
      %s276 = scalar_select %p275, %s274, 0
      %s277 = sadd.s32 %s19, %s20
      %p278 = scmp.lt.s32.totalorder %s277, 0
      %s279 = scalar_select %p278, %s277, 0
      %p280 = scmp.lt.s32.totalorder %s279, 0
      %s281 = scalar_select %p280, %s279, 0
      %s282 = smul.addr %s281, 8
      %s283 = scalar_lea.vmem %s1, %s282
      %s284 = sadd.s32 %s19, %s20
      %p285 = scmp.lt.s32.totalorder %s284, 0
      %s286 = scalar_select %p285, %s284, 0
      %s287 = sadd.s32 %s19, %s20
      %p288 = scmp.lt.s32.totalorder %s287, 0
      %s289 = scalar_select %p288, %s287, 0
      %p290 = scmp.lt.s32.totalorder %s289, 0
      %s291 = scalar_select %p290, %s289, 0
      %s292 = smul.addr %s291, 8
      %s293 = scalar_lea.vmem %s2, %s292
      %s294 = sadd.s32 %s19, %s20
      %p295 = scmp.lt.s32.totalorder %s294, 0
      %s296 = scalar_select %p295, %s294, 0
      %p297 = scmp.lt.s32.totalorder %s19, 1
      %s298 = scalar_select %p297, %s19, 1
      %s299 = scalar_lea.vmem %s4, %s298
      %p300 = scmp.eq.s32.totalorder %s20, 0
      // Predicated region
      $region37: #{tpu_custom_call.1} parent=35 // pred_check
        %p301 = pneg %p300
      $region38: #{tpu_custom_call.1} parent=35 // pred_check_branch
        %303 = sbr.rel (%p301) target = $region40
      $region39: #{tpu_custom_call.1} parent=35 // pred_region
        %vm304 = vcmask 7168
        %305 = vst.msk [vmem:[#allocation2] sm:$0xff] %vm304, 0.0
      $region40: #{tpu_custom_call.1} parent=35 // pred_fallthru
        _
      %v306 = vld [vmem:[%s273] sm:$0xff]
      %v307 = vld [vmem:[%s283] sm:$0xff]
      %v308 = vld [vmem:[%s293] sm:$0xff]
      %v309 = vld [vmem:[%s3] sm:$0xff]
      %v310 = vld [vmem:[%s3 + $0x8] sm:$0xff]
      %vm311 = vcmask 130048
      %v312 = vsel %vm311, %v306, -inf
      %313 = vmax.xlane.f32.xlu0 %v312
      %v314 = vpop.xlane.xlu0 %313
      %v315 = vsub.f32 %v306, %v314
      %v316 = vmul.f32 %v315, 1.442695
      %v317 = vpow.pop %v316
      %v318 = vsel %vm311, %v317, 0.0
      %319 = vadd.xlane.f32.xlu0 %v318
      %v320 = vpop.xlane.xlu0 %319
      %v321 = vlog2.pop %v320
      %v322 = vmul.f32 %v321, 0.6931472
      %vm323 = vcmask 7168
      %v324 = vsel %vm323, %v309, 0.0
      %v325 = vsel %vm323, %v310, 0.0
      %v326 = vadd.f32 %v324, %v325
      %327 = vadd.xlane.f32.xlu0 %v326
      %v328 = vpop.xlane.xlu0 %327
      %v329 = vrot.slane %v328, 4
      %v330 = vadd.f32 %v328, %v329
      %v331 = vrot.slane %v330, 2
      %v332 = vadd.f32 %v330, %v331
      %v333 = vrot.slane %v332, 1
      %v334 = vadd.f32 %v332, %v333
      %s335 = vtos %v334
      %v337 = vsel %vm311, %v315, 0
      %339 = vmatprep.subr.mxu0 0.0
      %v340 = vand.u32 %v309, 4294901760
      %341 = vmatpush1.msra.mxu0 %v340
      %342 = vmatprep.subr.mxu0 0.0
      %v343 = vand.u32 %v310, 4294901760
      %344 = vmatpush1.msra.mxu0 %v343
      %345 = vmatprep.subr.mxu0 0.0
      %346 = vmatpush1.msra.mxu0 0.0
      %347 = vmatprep.subr.mxu0 0.0
      %348 = vmatpush1.msra.mxu0 0.0
      %349 = vmatprep.subr.mxu0 0.0
      %350 = vmatpush1.msra.mxu0 0.0
      %351 = vmatprep.subr.mxu0 0.0
      %352 = vmatpush1.msra.mxu0 0.0
      %353 = vmatprep.subr.mxu0 0.0
      %354 = vmatpush1.msra.mxu0 0.0
      %355 = vmatprep.subr.mxu0 0.0
      %356 = vmatpush1.msra.mxu0 0.0
      %357 = vmatprep.subr.mxu0 0.0
      %358 = vmatpush1.msra.mxu0 0.0
      %359 = vmatprep.subr.mxu0 0.0
      %360 = vmatpush1.msra.mxu0 0.0
      %361 = vmatprep.subr.mxu0 0.0
      %362 = vmatpush1.msra.mxu0 0.0
      %363 = vmatprep.subr.mxu0 0.0
      %364 = vmatpush1.msra.mxu0 0.0
      %365 = vmatprep.subr.mxu0 0.0
      %366 = vmatpush1.msra.mxu0 0.0
      %367 = vmatprep.subr.mxu0 0.0
      %368 = vmatpush1.msra.mxu0 0.0
      %369 = vmatprep.subr.mxu0 0.0
      %370 = vmatpush1.msra.mxu0 0.0
      %371 = vmatprep.subr.mxu0 0.0
      %372 = vmatpush1.msra.mxu0 0.0
      %373 = vmatprep.subr.mxu0 0.0
      %374 = vmatpush1.msra.mxu0 0.0
      %375 = vmatprep.subr.mxu0 0.0
      %376 = vmatpush1.msra.mxu0 0.0
      %377 = vmatprep.subr.mxu0 0.0
      %378 = vmatpush1.msra.mxu0 0.0
      %379 = vmatprep.subr.mxu0 0.0
      %380 = vmatpush1.msra.mxu0 0.0
      %381 = vmatprep.subr.mxu0 0.0
      %382 = vmatpush1.msra.mxu0 0.0
      %383 = vmatprep.subr.mxu0 0.0
      %384 = vmatpush1.msra.mxu0 0.0
      %385 = vmatprep.subr.mxu0 0.0
      %386 = vmatpush1.msra.mxu0 0.0
      %387 = vmatprep.subr.mxu0 0.0
      %388 = vmatpush1.msra.mxu0 0.0
      %389 = vmatprep.subr.mxu0 0.0
      %390 = vmatpush1.msra.mxu0 0.0
      %391 = vmatprep.subr.mxu0 0.0
      %392 = vmatpush1.msra.mxu0 0.0
      %393 = vmatprep.subr.mxu0 0.0
      %394 = vmatpush1.msra.mxu0 0.0
      %395 = vmatprep.subr.mxu0 0.0
      %396 = vmatpush1.msra.mxu0 0.0
      %397 = vmatprep.subr.mxu0 0.0
      %398 = vmatpush1.msra.mxu0 0.0
      %399 = vmatprep.subr.mxu0 0.0
      %400 = vmatpush1.msra.mxu0 0.0
      %401 = vmatprep.subr.mxu0 0.0
      %402 = vmatpush1.msra.mxu0 0.0
      %403 = vmatprep.subr.mxu0 0.0
      %404 = vmatpush1.msra.mxu0 0.0
      %405 = vmatprep.mubr.f32.mxu0 0.0
      %v406 = vand.u32 %v337, 4294901760
      %v407 = vsub.f32 %v337, %v406
      %v408 = vand.u32 %v407, 4294901760
      %v409 = vsub.f32 %v407, %v408
      %v410 = vand.u32 %v409, 4294901760
      %411 = vmatmul.mubr.f32.gmra.mrb[0].mxu0 %v410
      %v412 = vpop.f32.mrb[0].mxu0
      %v413 = vadd.f32 0.0, %v412
      %v414 = vpop.f32.mrb[0].mxu0
      %415 = vdwg.mxu0
      %416 = vmatprep.subr.mxu0 0.0
      %v417 = vand.u32 %v309, 4294901760
      %v418 = vsub.f32 %v309, %v417
      %v419 = vand.u32 %v418, 4294901760
      %v420 = vsub.f32 %v418, %v419
      %v421 = vand.u32 %v420, 4294901760
      %422 = vmatpush1.msra.mxu0 %v421
      %423 = vmatprep.subr.mxu0 0.0
      %v424 = vand.u32 %v310, 4294901760
      %v425 = vsub.f32 %v310, %v424
      %v426 = vand.u32 %v425, 4294901760
      %v427 = vsub.f32 %v425, %v426
      %v428 = vand.u32 %v427, 4294901760
      %429 = vmatpush1.msra.mxu0 %v428
      %430 = vmatprep.subr.mxu0 0.0
      %431 = vmatpush1.msra.mxu0 0.0
      %432 = vmatprep.subr.mxu0 0.0
      %433 = vmatpush1.msra.mxu0 0.0
      %434 = vmatprep.subr.mxu0 0.0
      %435 = vmatpush1.msra.mxu0 0.0
      %436 = vmatprep.subr.mxu0 0.0
      %437 = vmatpush1.msra.mxu0 0.0
      %438 = vmatprep.subr.mxu0 0.0
      %439 = vmatpush1.msra.mxu0 0.0
      %440 = vmatprep.subr.mxu0 0.0
      %441 = vmatpush1.msra.mxu0 0.0
      %442 = vmatprep.subr.mxu0 0.0
      %443 = vmatpush1.msra.mxu0 0.0
      %444 = vmatprep.subr.mxu0 0.0
      %445 = vmatpush1.msra.mxu0 0.0
      %446 = vmatprep.subr.mxu0 0.0
      %447 = vmatpush1.msra.mxu0 0.0
      %448 = vmatprep.subr.mxu0 0.0
      %449 = vmatpush1.msra.mxu0 0.0
      %450 = vmatprep.subr.mxu0 0.0
      %451 = vmatpush1.msra.mxu0 0.0
      %452 = vmatprep.subr.mxu0 0.0
      %453 = vmatpush1.msra.mxu0 0.0
      %454 = vmatprep.subr.mxu0 0.0
      %455 = vmatpush1.msra.mxu0 0.0
      %456 = vmatprep.subr.mxu0 0.0
      %457 = vmatpush1.msra.mxu0 0.0
      %458 = vmatprep.subr.mxu0 0.0
      %459 = vmatpush1.msra.mxu0 0.0
      %460 = vmatprep.subr.mxu0 0.0
      %461 = vmatpush1.msra.mxu0 0.0
      %462 = vmatprep.subr.mxu0 0.0
      %463 = vmatpush1.msra.mxu0 0.0
      %464 = vmatprep.subr.mxu0 0.0
      %465 = vmatpush1.msra.mxu0 0.0
      %466 = vmatprep.subr.mxu0 0.0
      %467 = vmatpush1.msra.mxu0 0.0
      %468 = vmatprep.subr.mxu0 0.0
      %469 = vmatpush1.msra.mxu0 0.0
      %470 = vmatprep.subr.mxu0 0.0
      %471 = vmatpush1.msra.mxu0 0.0
      %472 = vmatprep.subr.mxu0 0.0
      %473 = vmatpush1.msra.mxu0 0.0
      %474 = vmatprep.subr.mxu0 0.0
      %475 = vmatpush1.msra.mxu0 0.0
      %476 = vmatprep.subr.mxu0 0.0
      %477 = vmatpush1.msra.mxu0 0.0
      %478 = vmatprep.subr.mxu0 0.0
      %479 = vmatpush1.msra.mxu0 0.0
      %480 = vmatprep.subr.mxu0 0.0
      %481 = vmatpush1.msra.mxu0 0.0
      %482 = vmatprep.subr.mxu0 0.0
      %483 = vmatpush1.msra.mxu0 0.0
      %484 = vmatprep.subr.mxu0 0.0
      %485 = vmatpush1.msra.mxu0 0.0
      %486 = vmatprep.subr.mxu0 0.0
      %487 = vmatpush1.msra.mxu0 0.0
      %488 = vmatprep.subr.mxu0 0.0
      %489 = vmatpush1.msra.mxu0 0.0
      %490 = vmatprep.mubr.f32.mxu0 0.0
      %v491 = vand.u32 %v337, 4294901760
      %492 = vmatmul.mubr.f32.gmra.mrb[0].mxu0 %v491
      %v493 = vpop.f32.mrb[0].mxu0
      %v494 = vadd.f32 %v413, %v493
      %v495 = vpop.f32.mrb[0].mxu0
      %496 = vdwg.mxu0
      %497 = vmatprep.subr.mxu0 0.0
      %v498 = vand.u32 %v309, 4294901760
      %v499 = vsub.f32 %v309, %v498
      %500 = vmatpush1.msra.mxu0 %v499
      %501 = vmatprep.subr.mxu0 0.0
      %v502 = vand.u32 %v310, 4294901760
      %v503 = vsub.f32 %v310, %v502
      %504 = vmatpush1.msra.mxu0 %v503
      %505 = vmatprep.subr.mxu0 0.0
      %506 = vmatpush1.msra.mxu0 0.0
      %507 = vmatprep.subr.mxu0 0.0
      %508 = vmatpush1.msra.mxu0 0.0
      %509 = vmatprep.subr.mxu0 0.0
      %510 = vmatpush1.msra.mxu0 0.0
      %511 = vmatprep.subr.mxu0 0.0
      %512 = vmatpush1.msra.mxu0 0.0
      %513 = vmatprep.subr.mxu0 0.0
      %514 = vmatpush1.msra.mxu0 0.0
      %515 = vmatprep.subr.mxu0 0.0
      %516 = vmatpush1.msra.mxu0 0.0
      %517 = vmatprep.subr.mxu0 0.0
      %518 = vmatpush1.msra.mxu0 0.0
      %519 = vmatprep.subr.mxu0 0.0
      %520 = vmatpush1.msra.mxu0 0.0
      %521 = vmatprep.subr.mxu0 0.0
      %522 = vmatpush1.msra.mxu0 0.0
      %523 = vmatprep.subr.mxu0 0.0
      %524 = vmatpush1.msra.mxu0 0.0
      %525 = vmatprep.subr.mxu0 0.0
      %526 = vmatpush1.msra.mxu0 0.0
      %527 = vmatprep.subr.mxu0 0.0
      %528 = vmatpush1.msra.mxu0 0.0
      %529 = vmatprep.subr.mxu0 0.0
      %530 = vmatpush1.msra.mxu0 0.0
      %531 = vmatprep.subr.mxu0 0.0
      %532 = vmatpush1.msra.mxu0 0.0
      %533 = vmatprep.subr.mxu0 0.0
      %534 = vmatpush1.msra.mxu0 0.0
      %535 = vmatprep.subr.mxu0 0.0
      %536 = vmatpush1.msra.mxu0 0.0
      %537 = vmatprep.subr.mxu0 0.0
      %538 = vmatpush1.msra.mxu0 0.0
      %539 = vmatprep.subr.mxu0 0.0
      %540 = vmatpush1.msra.mxu0 0.0
      %541 = vmatprep.subr.mxu0 0.0
      %542 = vmatpush1.msra.mxu0 0.0
      %543 = vmatprep.subr.mxu0 0.0
      %544 = vmatpush1.msra.mxu0 0.0
      %545 = vmatprep.subr.mxu0 0.0
      %546 = vmatpush1.msra.mxu0 0.0
      %547 = vmatprep.subr.mxu0 0.0
      %548 = vmatpush1.msra.mxu0 0.0
      %549 = vmatprep.subr.mxu0 0.0
      %550 = vmatpush1.msra.mxu0 0.0
      %551 = vmatprep.subr.mxu0 0.0
      %552 = vmatpush1.msra.mxu0 0.0
      %553 = vmatprep.subr.mxu0 0.0
      %554 = vmatpush1.msra.mxu0 0.0
      %555 = vmatprep.subr.mxu0 0.0
      %556 = vmatpush1.msra.mxu0 0.0
      %557 = vmatprep.subr.mxu0 0.0
      %558 = vmatpush1.msra.mxu0 0.0
      %559 = vmatprep.subr.mxu0 0.0
      %560 = vmatpush1.msra.mxu0 0.0
      %561 = vmatprep.subr.mxu0 0.0
      %562 = vmatpush1.msra.mxu0 0.0
      %563 = vmatprep.subr.mxu0 0.0
      %564 = vmatpush1.msra.mxu0 0.0
      %565 = vmatprep.mubr.f32.mxu0 0.0
      %v566 = vand.u32 %v337, 4294901760
      %v567 = vsub.f32 %v337, %v566
      %568 = vmatmul.mubr.f32.gmra.mrb[0].mxu0 %v567
      %v569 = vpop.f32.mrb[0].mxu0
      %v570 = vadd.f32 %v494, %v569
      %v571 = vpop.f32.mrb[0].mxu0
      %572 = vdwg.mxu0
      %573 = vmatprep.subr.mxu0 0.0
      %v574 = vand.u32 %v309, 4294901760
      %575 = vmatpush1.msra.mxu0 %v574
      %576 = vmatprep.subr.mxu0 0.0
      %v577 = vand.u32 %v310, 4294901760
      %578 = vmatpush1.msra.mxu0 %v577
      %579 = vmatprep.subr.mxu0 0.0
      %580 = vmatpush1.msra.mxu0 0.0
      %581 = vmatprep.subr.mxu0 0.0
      %582 = vmatpush1.msra.mxu0 0.0
      %583 = vmatprep.subr.mxu0 0.0
      %584 = vmatpush1.msra.mxu0 0.0
      %585 = vmatprep.subr.mxu0 0.0
      %586 = vmatpush1.msra.mxu0 0.0
      %587 = vmatprep.subr.mxu0 0.0
      %588 = vmatpush1.msra.mxu0 0.0
      %589 = vmatprep.subr.mxu0 0.0
      %590 = vmatpush1.msra.mxu0 0.0
      %591 = vmatprep.subr.mxu0 0.0
      %592 = vmatpush1.msra.mxu0 0.0
      %593 = vmatprep.subr.mxu0 0.0
      %594 = vmatpush1.msra.mxu0 0.0
      %595 = vmatprep.subr.mxu0 0.0
      %596 = vmatpush1.msra.mxu0 0.0
      %597 = vmatprep.subr.mxu0 0.0
      %598 = vmatpush1.msra.mxu0 0.0
      %599 = vmatprep.subr.mxu0 0.0
      %600 = vmatpush1.msra.mxu0 0.0
      %601 = vmatprep.subr.mxu0 0.0
      %602 = vmatpush1.msra.mxu0 0.0
      %603 = vmatprep.subr.mxu0 0.0
      %604 = vmatpush1.msra.mxu0 0.0
      %605 = vmatprep.subr.mxu0 0.0
      %606 = vmatpush1.msra.mxu0 0.0
      %607 = vmatprep.subr.mxu0 0.0
      %608 = vmatpush1.msra.mxu0 0.0
      %609 = vmatprep.subr.mxu0 0.0
      %610 = vmatpush1.msra.mxu0 0.0
      %611 = vmatprep.subr.mxu0 0.0
      %612 = vmatpush1.msra.mxu0 0.0
      %613 = vmatprep.subr.mxu0 0.0
      %614 = vmatpush1.msra.mxu0 0.0
      %615 = vmatprep.subr.mxu0 0.0
      %616 = vmatpush1.msra.mxu0 0.0
      %617 = vmatprep.subr.mxu0 0.0
      %618 = vmatpush1.msra.mxu0 0.0
      %619 = vmatprep.subr.mxu0 0.0
      %620 = vmatpush1.msra.mxu0 0.0
      %621 = vmatprep.subr.mxu0 0.0
      %622 = vmatpush1.msra.mxu0 0.0
      %623 = vmatprep.subr.mxu0 0.0
      %624 = vmatpush1.msra.mxu0 0.0
      %625 = vmatprep.subr.mxu0 0.0
      %626 = vmatpush1.msra.mxu0 0.0
      %627 = vmatprep.subr.mxu0 0.0
      %628 = vmatpush1.msra.mxu0 0.0
      %629 = vmatprep.subr.mxu0 0.0
      %630 = vmatpush1.msra.mxu0 0.0
      %631 = vmatprep.subr.mxu0 0.0
      %632 = vmatpush1.msra.mxu0 0.0
      %633 = vmatprep.subr.mxu0 0.0
      %634 = vmatpush1.msra.mxu0 0.0
      %635 = vmatprep.subr.mxu0 0.0
      %636 = vmatpush1.msra.mxu0 0.0
      %637 = vmatprep.subr.mxu0 0.0
      %638 = vmatpush1.msra.mxu0 0.0
      %639 = vmatprep.mubr.f32.mxu0 0.0
      %v640 = vand.u32 %v337, 4294901760
      %v641 = vsub.f32 %v337, %v640
      %v642 = vand.u32 %v641, 4294901760
      %643 = vmatmul.mubr.f32.gmra.mrb[0].mxu0 %v642
      %v644 = vpop.f32.mrb[0].mxu0
      %v645 = vadd.f32 %v570, %v644
      %v646 = vpop.f32.mrb[0].mxu0
      %647 = vdwg.mxu0
      %648 = vmatprep.subr.mxu0 0.0
      %v649 = vand.u32 %v309, 4294901760
      %v650 = vsub.f32 %v309, %v649
      %v651 = vand.u32 %v650, 4294901760
      %652 = vmatpush1.msra.mxu0 %v651
      %653 = vmatprep.subr.mxu0 0.0
      %v654 = vand.u32 %v310, 4294901760
      %v655 = vsub.f32 %v310, %v654
      %v656 = vand.u32 %v655, 4294901760
      %657 = vmatpush1.msra.mxu0 %v656
      %658 = vmatprep.subr.mxu0 0.0
      %659 = vmatpush1.msra.mxu0 0.0
      %660 = vmatprep.subr.mxu0 0.0
      %661 = vmatpush1.msra.mxu0 0.0
      %662 = vmatprep.subr.mxu0 0.0
      %663 = vmatpush1.msra.mxu0 0.0
      %664 = vmatprep.subr.mxu0 0.0
      %665 = vmatpush1.msra.mxu0 0.0
      %666 = vmatprep.subr.mxu0 0.0
      %667 = vmatpush1.msra.mxu0 0.0
      %668 = vmatprep.subr.mxu0 0.0
      %669 = vmatpush1.msra.mxu0 0.0
      %670 = vmatprep.subr.mxu0 0.0
      %671 = vmatpush1.msra.mxu0 0.0
      %672 = vmatprep.subr.mxu0 0.0
      %673 = vmatpush1.msra.mxu0 0.0
      %674 = vmatprep.subr.mxu0 0.0
      %675 = vmatpush1.msra.mxu0 0.0
      %676 = vmatprep.subr.mxu0 0.0
      %677 = vmatpush1.msra.mxu0 0.0
      %678 = vmatprep.subr.mxu0 0.0
      %679 = vmatpush1.msra.mxu0 0.0
      %680 = vmatprep.subr.mxu0 0.0
      %681 = vmatpush1.msra.mxu0 0.0
      %682 = vmatprep.subr.mxu0 0.0
      %683 = vmatpush1.msra.mxu0 0.0
      %684 = vmatprep.subr.mxu0 0.0
      %685 = vmatpush1.msra.mxu0 0.0
      %686 = vmatprep.subr.mxu0 0.0
      %687 = vmatpush1.msra.mxu0 0.0
      %688 = vmatprep.subr.mxu0 0.0
      %689 = vmatpush1.msra.mxu0 0.0
      %690 = vmatprep.subr.mxu0 0.0
      %691 = vmatpush1.msra.mxu0 0.0
      %692 = vmatprep.subr.mxu0 0.0
      %693 = vmatpush1.msra.mxu0 0.0
      %694 = vmatprep.subr.mxu0 0.0
      %695 = vmatpush1.msra.mxu0 0.0
      %696 = vmatprep.subr.mxu0 0.0
      %697 = vmatpush1.msra.mxu0 0.0
      %698 = vmatprep.subr.mxu0 0.0
      %699 = vmatpush1.msra.mxu0 0.0
      %700 = vmatprep.subr.mxu0 0.0
      %701 = vmatpush1.msra.mxu0 0.0
      %702 = vmatprep.subr.mxu0 0.0
      %703 = vmatpush1.msra.mxu0 0.0
      %704 = vmatprep.subr.mxu0 0.0
      %705 = vmatpush1.msra.mxu0 0.0
      %706 = vmatprep.subr.mxu0 0.0
      %707 = vmatpush1.msra.mxu0 0.0
      %708 = vmatprep.subr.mxu0 0.0
      %709 = vmatpush1.msra.mxu0 0.0
      %710 = vmatprep.subr.mxu0 0.0
      %711 = vmatpush1.msra.mxu0 0.0
      %712 = vmatprep.subr.mxu0 0.0
      %713 = vmatpush1.msra.mxu0 0.0
      %714 = vmatprep.subr.mxu0 0.0
      %715 = vmatpush1.msra.mxu0 0.0
      %716 = vmatprep.subr.mxu0 0.0
      %717 = vmatpush1.msra.mxu0 0.0
      %718 = vmatprep.mubr.f32.mxu0 0.0
      %v719 = vand.u32 %v337, 4294901760
      %720 = vmatmul.mubr.f32.gmra.mrb[0].mxu0 %v719
      %v721 = vpop.f32.mrb[0].mxu0
      %v722 = vadd.f32 %v645, %v721
      %v723 = vpop.f32.mrb[0].mxu0
      %724 = vdwg.mxu0
      %725 = vmatprep.subr.mxu0 0.0
      %v726 = vand.u32 %v309, 4294901760
      %727 = vmatpush1.msra.mxu0 %v726
      %728 = vmatprep.subr.mxu0 0.0
      %v729 = vand.u32 %v310, 4294901760
      %730 = vmatpush1.msra.mxu0 %v729
      %731 = vmatprep.subr.mxu0 0.0
      %732 = vmatpush1.msra.mxu0 0.0
      %733 = vmatprep.subr.mxu0 0.0
      %734 = vmatpush1.msra.mxu0 0.0
      %735 = vmatprep.subr.mxu0 0.0
      %736 = vmatpush1.msra.mxu0 0.0
      %737 = vmatprep.subr.mxu0 0.0
      %738 = vmatpush1.msra.mxu0 0.0
      %739 = vmatprep.subr.mxu0 0.0
      %740 = vmatpush1.msra.mxu0 0.0
      %741 = vmatprep.subr.mxu0 0.0
      %742 = vmatpush1.msra.mxu0 0.0
      %743 = vmatprep.subr.mxu0 0.0
      %744 = vmatpush1.msra.mxu0 0.0
      %745 = vmatprep.subr.mxu0 0.0
      %746 = vmatpush1.msra.mxu0 0.0
      %747 = vmatprep.subr.mxu0 0.0
      %748 = vmatpush1.msra.mxu0 0.0
      %749 = vmatprep.subr.mxu0 0.0
      %750 = vmatpush1.msra.mxu0 0.0
      %751 = vmatprep.subr.mxu0 0.0
      %752 = vmatpush1.msra.mxu0 0.0
      %753 = vmatprep.subr.mxu0 0.0
      %754 = vmatpush1.msra.mxu0 0.0
      %755 = vmatprep.subr.mxu0 0.0
      %756 = vmatpush1.msra.mxu0 0.0
      %757 = vmatprep.subr.mxu0 0.0
      %758 = vmatpush1.msra.mxu0 0.0
      %759 = vmatprep.subr.mxu0 0.0
      %760 = vmatpush1.msra.mxu0 0.0
      %761 = vmatprep.subr.mxu0 0.0
      %762 = vmatpush1.msra.mxu0 0.0
      %763 = vmatprep.subr.mxu0 0.0
      %764 = vmatpush1.msra.mxu0 0.0
      %765 = vmatprep.subr.mxu0 0.0
      %766 = vmatpush1.msra.mxu0 0.0
      %767 = vmatprep.subr.mxu0 0.0
      %768 = vmatpush1.msra.mxu0 0.0
      %769 = vmatprep.subr.mxu0 0.0
      %770 = vmatpush1.msra.mxu0 0.0
      %771 = vmatprep.subr.mxu0 0.0
      %772 = vmatpush1.msra.mxu0 0.0
      %773 = vmatprep.subr.mxu0 0.0
      %774 = vmatpush1.msra.mxu0 0.0
      %775 = vmatprep.subr.mxu0 0.0
      %776 = vmatpush1.msra.mxu0 0.0
      %777 = vmatprep.subr.mxu0 0.0
      %778 = vmatpush1.msra.mxu0 0.0
      %779 = vmatprep.subr.mxu0 0.0
      %780 = vmatpush1.msra.mxu0 0.0
      %781 = vmatprep.subr.mxu0 0.0
      %782 = vmatpush1.msra.mxu0 0.0
      %783 = vmatprep.subr.mxu0 0.0
      %784 = vmatpush1.msra.mxu0 0.0
      %785 = vmatprep.subr.mxu0 0.0
      %786 = vmatpush1.msra.mxu0 0.0
      %787 = vmatprep.subr.mxu0 0.0
      %788 = vmatpush1.msra.mxu0 0.0
      %789 = vmatprep.subr.mxu0 0.0
      %790 = vmatpush1.msra.mxu0 0.0
      %791 = vmatprep.mubr.f32.mxu0 0.0
      %v792 = vand.u32 %v337, 4294901760
      %793 = vmatmul.mubr.f32.gmra.mrb[0].mxu0 %v792
      %v794 = vpop.f32.mrb[0].mxu0
      %v795 = vadd.f32 %v722, %v794
      %v796 = vpop.f32.mrb[0].mxu0
      %797 = vdwg.mxu0
      %v798 = vlaneseq
      %v799 = vand.u32 %v798, 127
      %800 = vset.pattern.permute.xlu0 0
      %801 = vperm.xlu0 %800, %v307
      %v802 = vpop.permute.xlu0 %801
      %vm803 = vcmp.eq.s32.totalorder %v799, %v802
      %v804 = vsel %vm803, %v315, 0.0
      %v805 = vsel %vm311, %v804, 0.0
      %806 = vadd.xlane.f32.xlu0 %v805
      %v807 = vpop.xlane.xlu0 %806
      %v808 = vstv %s335
      %v809 = vmul.f32 %v322, %v808
      %v810 = vsub.f32 %v795, %v809
      %v811 = vmul.f32 %v810, -0.00625
      %v812 = vsub.f32 %v807, %v322
      %v813 = vmul.f32 %v308, %v812
      %v814 = vmul.f32 %v813, 0.89375
      %v815 = vsub.f32 %v811, %v814
      %s816 = sadd.s32 %s19, %s20
      %s817 = smul.u32 %s816, 8
      %v818 = vlaneseq
      %v819 = vshrl.u32 %v818, 7
      %v820 = vstv %s817
      %v821 = vadd.s32 %v819, %v820
      %vm822 = vcmp.lt.s32.totalorder %v821, 8
      %v823 = vsel %vm822, %v815, 0.0
      %v824 = vld [vmem:[#allocation2] sm:$0xff]
      %v825 = vadd.f32 %v824, %v823
      %826 = vst.msk [vmem:[#allocation2] sm:$0xff] %vm323, %v825
      // Predicated region
      $region41: #{tpu_custom_call.1} parent=35 // pred_check
        %p827 = pneg %p300
      $region42: #{tpu_custom_call.1} parent=35 // pred_check_branch
        %829 = sbr.rel (%p827) target = $region44
      $region43: #{tpu_custom_call.1} parent=35 // pred_region
        %v830 = vld [vmem:[#allocation2] sm:$0xff]
        %v831 = vsel %vm323, %v830, 0.0
        %v832 = vrot.slane %v831, 4
        %v833 = vadd.f32 %v831, %v832
        %v834 = vrot.slane %v833, 2
        %v835 = vadd.f32 %v833, %v834
        %v836 = vrot.slane %v835, 1
        %v837 = vadd.f32 %v835, %v836
        %vm838 = vcmask 0
        %839 = vst.msk [vmem:[%s299] sm:$0x1] %vm838, %v837
      $region44: #{tpu_custom_call.1} parent=35 // pred_fallthru
        _
      %p840 = scmp.lt.s32.totalorder %s19, 1
      %s841 = scalar_select %p840, %s19, 1
      %s842 = scalar_lea.vmem %s4, %s841
      // Predicated region
      $region45: #{tpu_custom_call.1} parent=35 // pred_check
        %p843 = pneg %p162
      $region46: #{tpu_custom_call.1} parent=35 // pred_check_branch
        %845 = sbr.rel (%p843) target = $region48
      $region47: #{tpu_custom_call.1} parent=35 // pred_region
        _
      $region48: #{tpu_custom_call.1} parent=35 // pred_fallthru
        _
    $region36: #{tpu_custom_call.1} parent=5 // pred_fallthru
      _
    %p846 = scmp.le.s32.totalorder 2, %s10
    // Predicated region
    $region49: #{tpu_custom_call.1} parent=5 // pred_check
      %p847 = pneg %p846
    $region50: #{tpu_custom_call.1} parent=5 // pred_check_branch
      %849 = sbr.rel (%p847) target = $region52
    $region51: #{tpu_custom_call.1} parent=5 // pred_region
      %s850 = ssub.s32 %s10, 2
      // Predicated region
      $region53: #{tpu_custom_call.1} parent=51 // pred_check
        %p851 = pneg %p168
      $region54: #{tpu_custom_call.1} parent=51 // pred_check_branch
        %853 = sbr.rel (%p851) target = $region56
      $region55: #{tpu_custom_call.1} parent=51 // pred_region
        %p854 = scmp.lt.s32.totalorder %s21, 1
        %s855 = scalar_select %p854, %s21, 1
        %s856 = scalar_lea.vmem %s4, %s855
      $region56: #{tpu_custom_call.1} parent=51 // pred_fallthru
        _
    $region52: #{tpu_custom_call.1} parent=5 // pred_fallthru
      _
  $region6: #{tpu_custom_call.1} parent=0 // loop_footer
    %s14 = sadd.s32 1, %s10
  $region7: #{tpu_custom_call.1} parent=0 // loop_footer_branch
    %9 = sbr.rel target = $region3
  $region8: #{tpu_custom_call.1} parent=0 // loop_exit
    _

</llo_original>
